<compile_context>
chip_gen: v7x
topology: tpu7x:2x2x1
jax: 0.10.0
libtpu: 0.0.40
codegen_flags: <defaults>
</compile_context>

<pallas_src>
import jax
import jax.numpy as jnp
import numpy as np
from jax.experimental import pallas as pl
from jax.experimental.pallas import tpu as pltpu

JACCARD_THRESH = 0.5
NEG_POS = 3
VARIANCES = (0.1, 0.2)


def _round_up(x, m):
    return ((x + m - 1) // m) * m


# --------------------------- SSD matching (glue, plain JAX) ------------------

def point_form(boxes):
    # (cx, cy, w, h) -> (xmin, ymin, xmax, ymax)
    return jnp.concatenate([boxes[:, :2] - boxes[:, 2:] / 2.0,
                            boxes[:, :2] + boxes[:, 2:] / 2.0], axis=1)


def jaccard(box_a, box_b):
    max_xy = jnp.minimum(box_a[:, None, 2:], box_b[None, :, 2:])
    min_xy = jnp.maximum(box_a[:, None, :2], box_b[None, :, :2])
    inter_wh = jnp.clip(max_xy - min_xy, 0.0, None)
    inter = inter_wh[..., 0] * inter_wh[..., 1]
    area_a = ((box_a[:, 2] - box_a[:, 0]) * (box_a[:, 3] - box_a[:, 1]))[:, None]
    area_b = ((box_b[:, 2] - box_b[:, 0]) * (box_b[:, 3] - box_b[:, 1]))[None, :]
    return inter / (area_a + area_b - inter)


def encode(matched, priors, variances):
    g_cxcy = (matched[:, :2] + matched[:, 2:]) / 2.0 - priors[:, :2]
    g_cxcy = g_cxcy / (variances[0] * priors[:, 2:])
    g_wh = (matched[:, 2:] - matched[:, :2]) / priors[:, 2:]
    g_wh = jnp.log(g_wh) / variances[1]
    return jnp.concatenate([g_cxcy, g_wh], axis=1)


def match(threshold, truths, priors, variances, labels):
    overlaps = jaccard(truths, point_form(priors))        # [num_obj, D]
    best_prior_idx = jnp.argmax(overlaps, axis=1)         # [num_obj]
    best_truth_overlap = jnp.max(overlaps, axis=0)        # [D]
    best_truth_idx = jnp.argmax(overlaps, axis=0)         # [D]
    best_truth_overlap = best_truth_overlap.at[best_prior_idx].set(2.0)
    best_truth_idx = best_truth_idx.at[best_prior_idx].set(
        jnp.arange(truths.shape[0], dtype=best_truth_idx.dtype))
    matches = truths[best_truth_idx]
    conf = labels[best_truth_idx].astype(jnp.int32) + 1
    conf = jnp.where(best_truth_overlap < threshold, 0, conf)
    loc = encode(matches, priors, variances)
    # TODO(synk): the original module allocates loc_t as a LongTensor (which
    # would truncate encoded offsets -- almost certainly a bug); we keep the
    # intended float32 encode semantics.
    return loc.astype(jnp.float32), conf.astype(jnp.int32)


# --------------------------- Pallas kernel (hot path) ------------------------

def _ssd_loss_kernel(conf_ref, locp_ref, loct_ref, label_ref, ce_ref, sl1_ref):
    # conf_ref : [C, td]   classes on sublanes, dbox on lanes
    # locp/loct: [4, td]
    # label_ref: [1, td]   int32
    conf = conf_ref[...].astype(jnp.float32)                       # [C, td]
    label = label_ref[...]                                         # [1, td]

    # per-box softmax cross-entropy: logsumexp(conf) - conf[label]
    m = jnp.max(conf, axis=0, keepdims=True)                       # [1, td]
    lse = m + jnp.log(jnp.sum(jnp.exp(conf - m), axis=0, keepdims=True))
    cls_ids = jax.lax.broadcasted_iota(jnp.int32, conf.shape, dimension=0)
    picked = jnp.sum(jnp.where(cls_ids == label, conf, 0.0),
                     axis=0, keepdims=True)                        # [1, td]
    ce_ref[...] = lse - picked

    # smooth-L1 loc loss summed over the 4 coords (sublane axis), masked by positives
    diff = locp_ref[...].astype(jnp.float32) - loct_ref[...].astype(jnp.float32)
    ad = jnp.abs(diff)
    sl1 = jnp.where(ad < 1.0, 0.5 * diff * diff, ad - 0.5)
    pos = (label > 0).astype(jnp.float32)
    sl1_ref[...] = jnp.sum(sl1, axis=0, keepdims=True) * pos


def per_box_losses_pallas(conf_data, loc_data, loc_t, conf_t_label, td=2048):
    """Per-default-box CE and smooth-L1 losses, returned as [B, D] arrays.

    Accepts f32 or bf16 conf/loc (kernel upcasts internally).
    """
    B, D, C = conf_data.shape
    N = B * D
    # Lane-dense tile: td on the 128-lane axis; clamp for tiny inputs.
    td = min(td, _round_up(N, 128))
    Np = _round_up(N, td)
    pad = Np - N

    # Fold batch into the row axis and transpose so dbox is the lane (last) axis.
    conf_r = jnp.transpose(conf_data.reshape(N, C))                 # [C, N]
    locp_r = jnp.transpose(loc_data.reshape(N, 4))                  # [4, N]
    loct_r = jnp.transpose(loc_t.reshape(N, 4).astype(jnp.float32)) # [4, N]
    label_r = conf_t_label.reshape(1, N).astype(jnp.int32)          # [1, N]
    if pad:
        conf_r = jnp.pad(conf_r, ((0, 0), (0, pad)))
        locp_r = jnp.pad(locp_r, ((0, 0), (0, pad)))
        loct_r = jnp.pad(loct_r, ((0, 0), (0, pad)))
        label_r = jnp.pad(label_r, ((0, 0), (0, pad)))

    grid = (pl.cdiv(Np, td),)
    ce, sl1 = pl.pallas_call(
        _ssd_loss_kernel,
        out_shape=(jax.ShapeDtypeStruct((1, Np), jnp.float32),
                   jax.ShapeDtypeStruct((1, Np), jnp.float32)),
        grid_spec=pltpu.PrefetchScalarGridSpec(
            num_scalar_prefetch=0,
            grid=grid,
            in_specs=[
                pl.BlockSpec((C, td), lambda i: (0, i)),
                pl.BlockSpec((4, td), lambda i: (0, i)),
                pl.BlockSpec((4, td), lambda i: (0, i)),
                pl.BlockSpec((1, td), lambda i: (0, i)),
            ],
            out_specs=(
                pl.BlockSpec((1, td), lambda i: (0, i)),
                pl.BlockSpec((1, td), lambda i: (0, i)),
            ),
        ),
        # Parallel dbox axis (lets Mosaic shard across TCs on v7x). Blocks are
        # tiny (<1 MiB double-buffered even at td=2048), so default scoped
        # VMEM is plenty on v5e/v6e/v7x.
        compiler_params=pltpu.CompilerParams(dimension_semantics=("parallel",)),
    )(conf_r, locp_r, loct_r, label_r)

    ce = ce[0, :N].reshape(B, D)
    sl1 = sl1[0, :N].reshape(B, D)
    return ce, sl1


def per_box_losses_ref(conf_data, loc_data, loc_t, conf_t_label):
    conf = conf_data.astype(jnp.float32)
    lse = jax.scipy.special.logsumexp(conf, axis=-1)
    picked = jnp.take_along_axis(conf, conf_t_label[..., None], axis=-1)[..., 0]
    ce = lse - picked
    diff = loc_data.astype(jnp.float32) - loc_t.astype(jnp.float32)
    ad = jnp.abs(diff)
    sl1 = jnp.where(ad < 1.0, 0.5 * diff * diff, ad - 0.5)
    pos = (conf_t_label > 0).astype(jnp.float32)
    return ce, jnp.sum(sl1, axis=-1) * pos


# --------------------------- Full MultiBoxLoss forward -----------------------

def multibox_loss(predictions, targets, per_box_fn=per_box_losses_pallas,
                  jaccard_thresh=JACCARD_THRESH, neg_pos=NEG_POS):
    loc_data, conf_data, dbox_list = predictions
    num_batch, num_dbox, _ = conf_data.shape

    # Matching: vmap over the batch when target shapes agree (common case);
    # fall back to a Python loop for ragged per-image object counts.
    shapes = {tuple(np.asarray(t.shape)) for t in targets}
    if len(shapes) == 1:
        tgt = jnp.stack(targets)                                    # [B, num_obj, 5]
        loc_t, conf_t_label = jax.vmap(
            lambda t: match(jaccard_thresh, t[:, :-1], dbox_list, VARIANCES, t[:, -1])
        )(tgt)
    else:
        loc_t_list, conf_t_list = [], []
        for idx in range(num_batch):
            truths = targets[idx][:, :-1]
            labels = targets[idx][:, -1]
            loc, conf = match(jaccard_thresh, truths, dbox_list, VARIANCES, labels)
            loc_t_list.append(loc)
            conf_t_list.append(conf)
        loc_t = jnp.stack(loc_t_list)
        conf_t_label = jnp.stack(conf_t_list)

    ce_all, sl1_all = per_box_fn(conf_data, loc_data, loc_t, conf_t_label)

    pos_mask = conf_t_label > 0
    loss_l = jnp.sum(sl1_all)                                       # smooth-L1 over positives

    num_pos = jnp.sum(pos_mask.astype(jnp.int32), axis=1, keepdims=True)  # [B, 1]

    # Hard negative mining: rank of each box's (positive-zeroed) CE loss in
    # descending order.  One argsort + a rank scatter (instead of the original
    # argsort-of-argsort) — identical semantics, half the sort cost.
    # TODO(synk): sort has no clean Pallas/TPU-vector equivalent; done in JAX.
    loss_c_mined = jnp.where(pos_mask, 0.0, ce_all)
    loss_idx = jnp.argsort(-loss_c_mined, axis=1)                   # descending order
    arange_d = jnp.arange(num_dbox, dtype=jnp.int32)
    idx_rank = jax.vmap(
        lambda li: jnp.zeros((num_dbox,), jnp.int32).at[li].set(arange_d)
    )(loss_idx)
    num_neg = jnp.minimum(num_pos * neg_pos, num_dbox)
    neg_mask = idx_rank < num_neg
    sel = jnp.logical_or(pos_mask, neg_mask)
    loss_c = jnp.sum(jnp.where(sel, ce_all, 0.0))

    # Guard against the all-negative 0/0 case (original PyTorch would NaN).
    N = jnp.maximum(jnp.sum(num_pos).astype(jnp.float32), 1.0)
    return loss_l / N, loss_c / N


# --------------------------- Example / test ----------------------------------

if __name__ == "__main__":
    key = jax.random.PRNGKey(0)
    B, D, C, NOBJ = 2, 256, 8, 3          # small shapes; real SSD is D=8732, C=21
    k1, k2, k3, k4, k5 = jax.random.split(key, 5)

    loc_data = 0.1 * jax.random.normal(k1, (B, D, 4), jnp.float32)
    conf_data = jax.random.normal(k2, (B, D, C), jnp.float32)

    # deterministic default boxes (cx, cy, w, h), all strictly positive sizes
    cxcy = jax.random.uniform(k3, (D, 2), minval=0.1, maxval=0.9)
    wh = jax.random.uniform(k4, (D, 2), minval=0.1, maxval=0.3)
    dbox_list = jnp.concatenate([cxcy, wh], axis=1).astype(jnp.float32)

    # targets: list of [num_objs, 5] = [xmin, ymin, xmax, ymax, label]
    targets = []
    tkeys = jax.random.split(k5, B)
    for b in range(B):
        ka, kb, kc = jax.random.split(tkeys[b], 3)
        mins = jax.random.uniform(ka, (NOBJ, 2), minval=0.0, maxval=0.5)
        sizes = jax.random.uniform(kb, (NOBJ, 2), minval=0.2, maxval=0.45)
        maxs = jnp.clip(mins + sizes, 0.0, 1.0)
        labels = jax.random.randint(kc, (NOBJ, 1), 0, C - 1).astype(jnp.float32)
        targets.append(jnp.concatenate([mins, maxs, labels], axis=1))

    preds = (loc_data, conf_data, dbox_list)

    loss_l, loss_c = multibox_loss(preds, targets, per_box_fn=per_box_losses_pallas)
    jax.block_until_ready((loss_l, loss_c))

    # sanity check against a pure-JAX reference of the same math
    ref_l, ref_c = multibox_loss(preds, targets, per_box_fn=per_box_losses_ref)
    np.testing.assert_allclose(float(loss_l), float(ref_l), rtol=1e-5, atol=1e-5)
    np.testing.assert_allclose(float(loss_c), float(ref_c), rtol=1e-5, atol=1e-5)

    # bf16 conf/loc also accepted at the kernel boundary (upcast in-kernel)
    ce_bf, sl1_bf = per_box_losses_pallas(conf_data.astype(jnp.bfloat16),
                                          loc_data.astype(jnp.bfloat16),
                                          jnp.stack([match(JACCARD_THRESH,
                                                           targets[b][:, :-1],
                                                           dbox_list, VARIANCES,
                                                           targets[b][:, -1])[0]
                                                     for b in range(B)]),
                                          jnp.stack([match(JACCARD_THRESH,
                                                           targets[b][:, :-1],
                                                           dbox_list, VARIANCES,
                                                           targets[b][:, -1])[1]
                                                     for b in range(B)]))
    jax.block_until_ready((ce_bf, sl1_bf))

    print("KERNEL_OK")
</pallas_src>

<mosaic_0001>
module attributes {stable_mosaic.version = 11 : i64} {
  func.func @_ssd_loss_kernel(%arg0: i32, %arg1: memref<8x512xf32, #tpu.memory_space<vmem>>, %arg2: memref<4x512xf32, #tpu.memory_space<vmem>>, %arg3: memref<4x512xf32, #tpu.memory_space<vmem>>, %arg4: memref<1x512xi32, #tpu.memory_space<vmem>>, %arg5: memref<1x512xf32, #tpu.memory_space<vmem>>, %arg6: memref<1x512xf32, #tpu.memory_space<vmem>>) attributes {dimension_semantics = [#tpu.dimension_semantics<parallel>], iteration_bounds = array<i64: 1>, scalar_prefetch = 0 : i64, scratch_operands = 0 : i64, tpu.core_type = #tpu.core_type<tc>, window_params = [{transform_indices = @transform_0, window_bounds = array<i64: 8, 512>}, {transform_indices = @transform_1, window_bounds = array<i64: 4, 512>}, {transform_indices = @transform_2, window_bounds = array<i64: 4, 512>}, {transform_indices = @transform_3, window_bounds = array<i64: 1, 512>}, {transform_indices = @transform_4, window_bounds = array<i64: 1, 512>}, {transform_indices = @transform_5, window_bounds = array<i64: 1, 512>}]} {
    %c0 = arith.constant 0 : index
    %c0_0 = arith.constant 0 : index
    %0 = vector.load %arg1[%c0, %c0_0] : memref<8x512xf32, #tpu.memory_space<vmem>>, vector<8x512xf32>
    %c0_1 = arith.constant 0 : index
    %c0_2 = arith.constant 0 : index
    %1 = vector.load %arg4[%c0_1, %c0_2] : memref<1x512xi32, #tpu.memory_space<vmem>>, vector<1x512xi32>
    %cst = arith.constant dense<0xFF800000> : vector<512xf32>
    %2 = vector.multi_reduction <maximumf>, %0, %cst [0] : vector<8x512xf32> to vector<512xf32>
    %3 = vector.shape_cast %2 : vector<512xf32> to vector<1x512xf32>
    %4 = vector.broadcast %3 : vector<1x512xf32> to vector<8x512xf32>
    %5 = arith.subf %0, %4 : vector<8x512xf32>
    %6 = math.exp %5 : vector<8x512xf32>
    %cst_3 = arith.constant dense<0.000000e+00> : vector<512xf32>
    %7 = vector.multi_reduction <add>, %6, %cst_3 [0] : vector<8x512xf32> to vector<512xf32>
    %8 = vector.shape_cast %7 : vector<512xf32> to vector<1x512xf32>
    %9 = math.log %8 : vector<1x512xf32>
    %10 = arith.addf %3, %9 : vector<1x512xf32>
    %11 = tpu.iota {dimensions = array<i32: 0>} : vector<8x512xi32>
    %12 = vector.broadcast %1 : vector<1x512xi32> to vector<8x512xi32>
    %13 = arith.cmpi eq, %11, %12 : vector<8x512xi32>
    %cst_4 = arith.constant 0.000000e+00 : f32
    %14 = vector.broadcast %cst_4 : f32 to vector<8x512xf32>
    %15 = arith.select %13, %0, %14 : vector<8x512xi1>, vector<8x512xf32>
    %cst_5 = arith.constant dense<0.000000e+00> : vector<512xf32>
    %16 = vector.multi_reduction <add>, %15, %cst_5 [0] : vector<8x512xf32> to vector<512xf32>
    %17 = vector.shape_cast %16 : vector<512xf32> to vector<1x512xf32>
    %18 = arith.subf %10, %17 : vector<1x512xf32>
    %c0_6 = arith.constant 0 : index
    %c0_7 = arith.constant 0 : index
    %19 = vector.load %arg5[%c0_6, %c0_7] : memref<1x512xf32, #tpu.memory_space<vmem>>, vector<1x512xf32>
    tpu.vector_store %arg5[%c0_6, %c0_7], %18 {strides = array<i32>} : memref<1x512xf32, #tpu.memory_space<vmem>>, vector<1x512xf32>,
    %c0_8 = arith.constant 0 : index
    %c0_9 = arith.constant 0 : index
    %20 = vector.load %arg2[%c0_8, %c0_9] : memref<4x512xf32, #tpu.memory_space<vmem>>, vector<4x512xf32>
    %c0_10 = arith.constant 0 : index
    %c0_11 = arith.constant 0 : index
    %21 = vector.load %arg3[%c0_10, %c0_11] : memref<4x512xf32, #tpu.memory_space<vmem>>, vector<4x512xf32>
    %22 = arith.subf %20, %21 : vector<4x512xf32>
    %23 = math.absf %22 : vector<4x512xf32>
    %cst_12 = arith.constant 1.000000e+00 : f32
    %24 = vector.broadcast %cst_12 : f32 to vector<4x512xf32>
    %25 = arith.cmpf olt, %23, %24 : vector<4x512xf32>
    %cst_13 = arith.constant 5.000000e-01 : f32
    %26 = vector.broadcast %cst_13 : f32 to vector<4x512xf32>
    %27 = arith.mulf %26, %22 : vector<4x512xf32>
    %28 = arith.mulf %27, %22 : vector<4x512xf32>
    %cst_14 = arith.constant 5.000000e-01 : f32
    %29 = vector.broadcast %cst_14 : f32 to vector<4x512xf32>
    %30 = arith.subf %23, %29 : vector<4x512xf32>
    %31 = arith.select %25, %28, %30 : vector<4x512xi1>, vector<4x512xf32>
    %c0_i32 = arith.constant 0 : i32
    %32 = vector.broadcast %c0_i32 : i32 to vector<1x512xi32>
    %33 = arith.cmpi sgt, %1, %32 : vector<1x512xi32>
    %34 = arith.extui %33 : vector<1x512xi1> to vector<1x512xi32>
    %35 = arith.sitofp %34 : vector<1x512xi32> to vector<1x512xf32>
    %cst_15 = arith.constant dense<0.000000e+00> : vector<512xf32>
    %36 = vector.multi_reduction <add>, %31, %cst_15 [0] : vector<4x512xf32> to vector<512xf32>
    %37 = vector.shape_cast %36 : vector<512xf32> to vector<1x512xf32>
    %38 = arith.mulf %37, %35 : vector<1x512xf32>
    %c0_16 = arith.constant 0 : index
    %c0_17 = arith.constant 0 : index
    %39 = vector.load %arg6[%c0_16, %c0_17] : memref<1x512xf32, #tpu.memory_space<vmem>>, vector<1x512xf32>
    tpu.vector_store %arg6[%c0_16, %c0_17], %38 {strides = array<i32>} : memref<1x512xf32, #tpu.memory_space<vmem>>, vector<1x512xf32>,
    return
  }
  func.func @transform_0(%arg0: i32) -> (i32, i32) {
    %c0_i32 = arith.constant 0 : i32
    %c0_i32_0 = arith.constant 0 : i32
    return %c0_i32, %arg0 : i32, i32
  }
  func.func @transform_1(%arg0: i32) -> (i32, i32) {
    %c0_i32 = arith.constant 0 : i32
    %c0_i32_0 = arith.constant 0 : i32
    return %c0_i32, %arg0 : i32, i32
  }
  func.func @transform_2(%arg0: i32) -> (i32, i32) {
    %c0_i32 = arith.constant 0 : i32
    %c0_i32_0 = arith.constant 0 : i32
    return %c0_i32, %arg0 : i32, i32
  }
  func.func @transform_3(%arg0: i32) -> (i32, i32) {
    %c0_i32 = arith.constant 0 : i32
    %c0_i32_0 = arith.constant 0 : i32
    return %c0_i32, %arg0 : i32, i32
  }
  func.func @transform_4(%arg0: i32) -> (i32, i32) {
    %c0_i32 = arith.constant 0 : i32
    %c0_i32_0 = arith.constant 0 : i32
    return %c0_i32, %arg0 : i32, i32
  }
  func.func @transform_5(%arg0: i32) -> (i32, i32) {
    %c0_i32 = arith.constant 0 : i32
    %c0_i32_0 = arith.constant 0 : i32
    return %c0_i32, %arg0 : i32, i32
  }
}

</mosaic_0001>

<llo_original>
// kernel: tpu_custom_call.1
$region0: #{tpu_custom_call.1}
  #allocation0 [shape = 'u32[]', space=smem, size = 0x4, offset = 0x4, fixed_abs, tag = 'smem constant byte address 0x4 - core index']
  #allocation1 [shape = 'u32[144,128]{1,0:T(1,128)}', space=vmem, size = 0x12000, scoped, tag = 'internal scratch']
  %s0 = inlined_call_operand.hbm [shape: f32[8,512], index: 0, kind: input, shape index: {}]
  %s1 = inlined_call_operand.hbm [shape: f32[4,512], index: 1, kind: input, shape index: {}]
  %s2 = inlined_call_operand.hbm [shape: f32[4,512], index: 2, kind: input, shape index: {}]
  %s3 = inlined_call_operand.vmem [shape: s32[1,512], index: 3, kind: input, shape index: {}]
  %s4 = inlined_call_operand.hbm [shape: f32[1,512], index: 4, kind: output, shape index: {0}]
  %s5 = inlined_call_operand.hbm [shape: f32[1,512], index: 5, kind: output, shape index: {1}]
  %6 = xla_tuple %s4, %s5
  %s7 = sld [smem:[#allocation0]]
  $region46: #{tpu_custom_call.1} parent=0
    _
  %s9 = ssub.s32 1, %s7
  %s10 = scalar_select 0, %s9, %s7
  $region1: #{tpu_custom_call.1} parent=0
    #allocation2 [shape = 'u8[16384]{0}', space=vmem, size = 0x4000, scoped, tag = 'input window, operand 0, single buffered']
    #allocation3 [shape = 's32[1]{0}', space=sflag, size = 0x4, scoped, tag = 'scoped memory for tpu_custom_call.1']
    #allocation4 [shape = 's32[1]{0}', space=sflag, size = 0x4, scoped, tag = 'scoped memory for tpu_custom_call.1']
    #allocation5 [shape = 'u8[8192]{0}', space=vmem, size = 0x2000, scoped, tag = 'input window, operand 1, single buffered']
    #allocation6 [shape = 's32[1]{0}', space=sflag, size = 0x4, scoped, tag = 'scoped memory for tpu_custom_call.1']
    #allocation7 [shape = 'u8[8192]{0}', space=vmem, size = 0x2000, scoped, tag = 'input window, operand 2, single buffered']
    #allocation8 [shape = 'u8[2048]{0}', space=vmem, size = 0x800, scoped, tag = 'output window, operand 0, single buffered']
    #allocation9 [shape = 'u8[2048]{0}', space=vmem, size = 0x800, scoped, tag = 'output window, operand 1, single buffered']
    #allocation10 [shape = 's32[1]{0}', space=sflag, size = 0x4, scoped, tag = 'scoped memory for tpu_custom_call.1']
    %11 = vsyncpa [#allocation3], 0
    %12 = vsyncpa [#allocation6], 0
    %13 = vsyncpa [#allocation4], 0
    %14 = vsyncpa [#allocation10], 0
    // Predicated region
    $region2: #{tpu_custom_call.1} parent=1 // pred_check
      _
    $region3: #{tpu_custom_call.1} parent=1 // pred_check_branch
      %16 = sbr.rel (0) target = $region5
    $region4: #{tpu_custom_call.1} parent=1 // pred_region
      %s18 = ssub.s32 512, 512
      %19 = vsyncadd [#allocation3], %s18
      %s21 = sshll.u32 [#allocation2], 4
      %s22 = int_to_ptr.vmem [resolvable:$true] %s21
      %24 = dma.hbm_to_vmem [thread:$0]  %s0, 512, %s22, [#allocation3]
    $region5: #{tpu_custom_call.1} parent=1 // pred_fallthru
      _
    // Predicated region
    $region6: #{tpu_custom_call.1} parent=1 // pred_check
      _
    $region7: #{tpu_custom_call.1} parent=1 // pred_check_branch
      %26 = sbr.rel (0) target = $region9
    $region8: #{tpu_custom_call.1} parent=1 // pred_region
      %s28 = ssub.s32 256, 256
      %29 = vsyncadd [#allocation6], %s28
      %s31 = sshll.u32 [#allocation5], 4
      %s32 = int_to_ptr.vmem [resolvable:$true] %s31
      %34 = dma.hbm_to_vmem [thread:$0]  %s1, 256, %s32, [#allocation6]
    $region9: #{tpu_custom_call.1} parent=1 // pred_fallthru
      _
    // Predicated region
    $region10: #{tpu_custom_call.1} parent=1 // pred_check
      _
    $region11: #{tpu_custom_call.1} parent=1 // pred_check_branch
      %36 = sbr.rel (0) target = $region13
    $region12: #{tpu_custom_call.1} parent=1 // pred_region
      %s38 = ssub.s32 256, 256
      %39 = vsyncadd [#allocation6], %s38
      %s41 = sshll.u32 [#allocation7], 4
      %s42 = int_to_ptr.vmem [resolvable:$true] %s41
      %44 = dma.hbm_to_vmem [thread:$0]  %s2, 256, %s42, [#allocation6]
    $region13: #{tpu_custom_call.1} parent=1 // pred_fallthru
      _
    // Predicated region
    $region14: #{tpu_custom_call.1} parent=1 // pred_check
      _
    $region15: #{tpu_custom_call.1} parent=1 // pred_check_branch
      %46 = sbr.rel (0) target = $region17
    $region16: #{tpu_custom_call.1} parent=1 // pred_region
      _
    $region17: #{tpu_custom_call.1} parent=1 // pred_fallthru
      _
    // Predicated region
    $region18: #{tpu_custom_call.1} parent=1 // pred_check
      _
    $region19: #{tpu_custom_call.1} parent=1 // pred_check_branch
      %48 = sbr.rel (0) target = $region21
    $region20: #{tpu_custom_call.1} parent=1 // pred_region
      %49 = dma.done [#allocation3], 512
    $region21: #{tpu_custom_call.1} parent=1 // pred_fallthru
      _
    // Predicated region
    $region22: #{tpu_custom_call.1} parent=1 // pred_check
      _
    $region23: #{tpu_custom_call.1} parent=1 // pred_check_branch
      %51 = sbr.rel (0) target = $region25
    $region24: #{tpu_custom_call.1} parent=1 // pred_region
      %52 = dma.done [#allocation6], 256
    $region25: #{tpu_custom_call.1} parent=1 // pred_fallthru
      _
    // Predicated region
    $region26: #{tpu_custom_call.1} parent=1 // pred_check
      _
    $region27: #{tpu_custom_call.1} parent=1 // pred_check_branch
      %54 = sbr.rel (0) target = $region29
    $region28: #{tpu_custom_call.1} parent=1 // pred_region
      %55 = dma.done [#allocation6], 256
    $region29: #{tpu_custom_call.1} parent=1 // pred_fallthru
      _
    %v56 = vld [vmem:[#allocation2] sm:$0xff]
    %v57 = vld [vmem:[#allocation2 + $0x8] sm:$0xff]
    %v58 = vld [vmem:[#allocation2 + $0x10] sm:$0xff]
    %v59 = vld [vmem:[#allocation2 + $0x18] sm:$0xff]
    %v60 = vld [vmem:[%s3] sm:$0xf]
    %v61 = vrot.slane %v56, 4
    %v62 = vmax.f32 %v56, %v61
    %v63 = vrot.slane %v62, 2
    %v64 = vmax.f32 %v62, %v63
    %v65 = vrot.slane %v64, 1
    %v66 = vmax.f32 %v64, %v65
    %v67 = vrot.slane %v57, 4
    %v68 = vmax.f32 %v57, %v67
    %v69 = vrot.slane %v68, 2
    %v70 = vmax.f32 %v68, %v69
    %v71 = vrot.slane %v70, 1
    %v72 = vmax.f32 %v70, %v71
    %v73 = vrot.slane %v58, 4
    %v74 = vmax.f32 %v58, %v73
    %v75 = vrot.slane %v74, 2
    %v76 = vmax.f32 %v74, %v75
    %v77 = vrot.slane %v76, 1
    %v78 = vmax.f32 %v76, %v77
    %v79 = vrot.slane %v59, 4
    %v80 = vmax.f32 %v59, %v79
    %v81 = vrot.slane %v80, 2
    %v82 = vmax.f32 %v80, %v81
    %v83 = vrot.slane %v82, 1
    %v84 = vmax.f32 %v82, %v83
    %v85 = vsub.f32 %v56, %v66
    %v86 = vsub.f32 %v57, %v72
    %v87 = vsub.f32 %v58, %v78
    %v88 = vsub.f32 %v59, %v84
    %v89 = vmul.f32 %v85, 1.442695
    %v90 = vpow.pop %v89
    %v91 = vmul.f32 %v86, 1.442695
    %v92 = vpow.pop %v91
    %v93 = vmul.f32 %v87, 1.442695
    %v94 = vpow.pop %v93
    %v95 = vmul.f32 %v88, 1.442695
    %v96 = vpow.pop %v95
    %v97 = vrot.slane %v90, 4
    %v98 = vadd.f32 %v90, %v97
    %v99 = vrot.slane %v98, 2
    %v100 = vadd.f32 %v98, %v99
    %v101 = vrot.slane %v100, 1
    %v102 = vadd.f32 %v100, %v101
    %v103 = vrot.slane %v92, 4
    %v104 = vadd.f32 %v92, %v103
    %v105 = vrot.slane %v104, 2
    %v106 = vadd.f32 %v104, %v105
    %v107 = vrot.slane %v106, 1
    %v108 = vadd.f32 %v106, %v107
    %v109 = vrot.slane %v94, 4
    %v110 = vadd.f32 %v94, %v109
    %v111 = vrot.slane %v110, 2
    %v112 = vadd.f32 %v110, %v111
    %v113 = vrot.slane %v112, 1
    %v114 = vadd.f32 %v112, %v113
    %v115 = vrot.slane %v96, 4
    %v116 = vadd.f32 %v96, %v115
    %v117 = vrot.slane %v116, 2
    %v118 = vadd.f32 %v116, %v117
    %v119 = vrot.slane %v118, 1
    %v120 = vadd.f32 %v118, %v119
    %v121 = vlog2.pop %v102
    %v122 = vmul.f32 %v121, 0.6931472
    %v123 = vlog2.pop %v108
    %v124 = vmul.f32 %v123, 0.6931472
    %v125 = vlog2.pop %v114
    %v126 = vmul.f32 %v125, 0.6931472
    %v127 = vlog2.pop %v120
    %v128 = vmul.f32 %v127, 0.6931472
    %v129 = vadd.f32 %v66, %v122
    %v130 = vadd.f32 %v72, %v124
    %v131 = vadd.f32 %v78, %v126
    %v132 = vadd.f32 %v84, %v128
    %v133 = vlaneseq
    %v134 = vshrl.u32 %v133, 7
    %v135 = vlaneseq
    %v136 = vshrl.u32 %v135, 7
    %v137 = vsub.s32 0, %v136
    %v138 = vrot.slane %v60, %v137
    %v139 = vlaneseq
    %v140 = vshrl.u32 %v139, 7
    %v141 = vsub.s32 1, %v140
    %v142 = vrot.slane %v60, %v141
    %v143 = vlaneseq
    %v144 = vshrl.u32 %v143, 7
    %v145 = vsub.s32 2, %v144
    %v146 = vrot.slane %v60, %v145
    %v147 = vlaneseq
    %v148 = vshrl.u32 %v147, 7
    %v149 = vsub.s32 3, %v148
    %v150 = vrot.slane %v60, %v149
    %vm151 = vcmp.eq.s32.totalorder %v134, %v138
    %vm152 = vcmp.eq.s32.totalorder %v134, %v142
    %vm153 = vcmp.eq.s32.totalorder %v134, %v146
    %vm154 = vcmp.eq.s32.totalorder %v134, %v150
    %v155 = vsel %vm151, %v56, 0.0
    %v156 = vsel %vm152, %v57, 0.0
    %v157 = vsel %vm153, %v58, 0.0
    %v158 = vsel %vm154, %v59, 0.0
    %v159 = vrot.slane %v155, 4
    %v160 = vadd.f32 %v155, %v159
    %v161 = vrot.slane %v160, 2
    %v162 = vadd.f32 %v160, %v161
    %v163 = vrot.slane %v162, 1
    %v164 = vadd.f32 %v162, %v163
    %v165 = vrot.slane %v156, 4
    %v166 = vadd.f32 %v156, %v165
    %v167 = vrot.slane %v166, 2
    %v168 = vadd.f32 %v166, %v167
    %v169 = vrot.slane %v168, 1
    %v170 = vadd.f32 %v168, %v169
    %v171 = vrot.slane %v157, 4
    %v172 = vadd.f32 %v157, %v171
    %v173 = vrot.slane %v172, 2
    %v174 = vadd.f32 %v172, %v173
    %v175 = vrot.slane %v174, 1
    %v176 = vadd.f32 %v174, %v175
    %v177 = vrot.slane %v158, 4
    %v178 = vadd.f32 %v158, %v177
    %v179 = vrot.slane %v178, 2
    %v180 = vadd.f32 %v178, %v179
    %v181 = vrot.slane %v180, 1
    %v182 = vadd.f32 %v180, %v181
    %v183 = vsub.f32 %v129, %v164
    %v184 = vsub.f32 %v130, %v170
    %v185 = vsub.f32 %v131, %v176
    %v186 = vsub.f32 %v132, %v182
    %v191 = vcombine.low %v183, %v184
    %v192 = vcombine.low %v185, %v186
    %v194 = vunpack.c.l.s4 1966171168
    %v195 = vunpack.c.0.s8 %v194
    %v196 = vlaneseq
    %v197 = vshrl.u32 %v196, 7
    %v198 = vsub.s32 %v195, %v197
    %v199 = vrot.slane %v191, %v198
    %v201 = vunpack.c.l.s4 1966171168
    %v202 = vunpack.c.0.s8 %v201
    %v203 = vlaneseq
    %v204 = vshrl.u32 %v203, 7
    %v205 = vsub.s32 %v202, %v204
    %v206 = vrot.slane %v192, %v205
    %v207 = vcombine.low %v199, %v206
    %v209 = vunpack.c.l.s4 1966171168
    %v210 = vunpack.c.0.s8 %v209
    %v211 = vlaneseq
    %v212 = vshrl.u32 %v211, 7
    %v213 = vsub.s32 %v210, %v212
    %v214 = vrot.slane %v207, %v213
    %v216 = vlaneseq
    %vm217 = vcmp.ge.s32.totalorder %v216, 0
    %vm218 = vcmp.lt.s32.totalorder %v216, 512
    %vm219 = vmand %vm217, %vm218
    %220 = vst.msk [vmem:[#allocation8] sm:$0xf] %vm219, %v214
    %v221 = vld [vmem:[#allocation5] sm:$0xff]
    %v222 = vld [vmem:[#allocation5 + $0x8] sm:$0xff]
    %v223 = vld [vmem:[#allocation7] sm:$0xff]
    %v224 = vld [vmem:[#allocation7 + $0x8] sm:$0xff]
    %v225 = vsub.f32 %v221, %v223
    %v226 = vsub.f32 %v222, %v224
    %v227 = vand.u32 2147483647, %v225
    %v228 = vand.u32 2147483647, %v226
    %vm229 = vcmp.lt.f32.partialorder %v227, 1.0
    %vm230 = vcmp.lt.f32.partialorder %v228, 1.0
    %v231 = vmul.f32 %v225, 0.5
    %v232 = vmul.f32 %v226, 0.5
    %v233 = vmul.f32 %v231, %v225
    %v234 = vmul.f32 %v232, %v226
    %v235 = vsub.f32 %v227, 0.5
    %v236 = vsub.f32 %v228, 0.5
    %v237 = vsel %vm229, %v233, %v235
    %v238 = vsel %vm230, %v234, %v236
    %vm239 = vcmp.gt.s32.totalorder %v60, 0
    %v240 = vsel %vm239, 1, 0
    %v241 = vcvt.s32.f32 %v240
    %v244 = vcombine.high %v237, %v237
    %v245 = vcombine.high %v238, %v238
    %vm248 = vcmask 1043456
    %v249 = vsel %vm248, %v237, 0.0
    %v250 = vrot.slane %v249, 4
    %v251 = vadd.f32 %v249, %v250
    %v252 = vrot.slane %v251, 2
    %v253 = vadd.f32 %v251, %v252
    %v254 = vrot.slane %v253, 1
    %v255 = vadd.f32 %v253, %v254
    %v256 = vsel %vm248, %v244, 0.0
    %v257 = vrot.slane %v256, 4
    %v258 = vadd.f32 %v256, %v257
    %v259 = vrot.slane %v258, 2
    %v260 = vadd.f32 %v258, %v259
    %v261 = vrot.slane %v260, 1
    %v262 = vadd.f32 %v260, %v261
    %v263 = vsel %vm248, %v238, 0.0
    %v264 = vrot.slane %v263, 4
    %v265 = vadd.f32 %v263, %v264
    %v266 = vrot.slane %v265, 2
    %v267 = vadd.f32 %v265, %v266
    %v268 = vrot.slane %v267, 1
    %v269 = vadd.f32 %v267, %v268
    %v270 = vsel %vm248, %v245, 0.0
    %v271 = vrot.slane %v270, 4
    %v272 = vadd.f32 %v270, %v271
    %v273 = vrot.slane %v272, 2
    %v274 = vadd.f32 %v272, %v273
    %v275 = vrot.slane %v274, 1
    %v276 = vadd.f32 %v274, %v275
    %v278 = vlaneseq
    %v279 = vshrl.u32 %v278, 7
    %v280 = vsub.s32 0, %v279
    %v281 = vrot.slane %v241, %v280
    %v282 = vlaneseq
    %v283 = vshrl.u32 %v282, 7
    %v284 = vsub.s32 1, %v283
    %v285 = vrot.slane %v241, %v284
    %v286 = vlaneseq
    %v287 = vshrl.u32 %v286, 7
    %v288 = vsub.s32 2, %v287
    %v289 = vrot.slane %v241, %v288
    %v290 = vlaneseq
    %v291 = vshrl.u32 %v290, 7
    %v292 = vsub.s32 3, %v291
    %v293 = vrot.slane %v241, %v292
    %v298 = vmul.f32 %v255, %v281
    %v299 = vmul.f32 %v262, %v285
    %v300 = vmul.f32 %v269, %v289
    %v301 = vmul.f32 %v276, %v293
    %v306 = vcombine.low %v298, %v299
    %v307 = vcombine.low %v300, %v301
    %v309 = vunpack.c.l.s4 1966171168
    %v310 = vunpack.c.0.s8 %v309
    %v311 = vlaneseq
    %v312 = vshrl.u32 %v311, 7
    %v313 = vsub.s32 %v310, %v312
    %v314 = vrot.slane %v306, %v313
    %v316 = vunpack.c.l.s4 1966171168
    %v317 = vunpack.c.0.s8 %v316
    %v318 = vlaneseq
    %v319 = vshrl.u32 %v318, 7
    %v320 = vsub.s32 %v317, %v319
    %v321 = vrot.slane %v307, %v320
    %v322 = vcombine.low %v314, %v321
    %v324 = vunpack.c.l.s4 1966171168
    %v325 = vunpack.c.0.s8 %v324
    %v326 = vlaneseq
    %v327 = vshrl.u32 %v326, 7
    %v328 = vsub.s32 %v325, %v327
    %v329 = vrot.slane %v322, %v328
    %331 = vst.msk [vmem:[#allocation9] sm:$0xf] %vm219, %v329
    // Predicated region
    $region30: #{tpu_custom_call.1} parent=1 // pred_check
      _
    $region31: #{tpu_custom_call.1} parent=1 // pred_check_branch
      %333 = sbr.rel (0) target = $region33
    $region32: #{tpu_custom_call.1} parent=1 // pred_region
      %s335 = ssub.s32 64, 64
      %336 = vsyncadd [#allocation4], %s335
      %s338 = sshll.u32 [#allocation8], 4
      %s339 = int_to_ptr.vmem [resolvable:$true] %s338
      %341 = dma.vmem_to_hbm [thread:$0]  %s339, 64, %s4, [#allocation4]
    $region33: #{tpu_custom_call.1} parent=1 // pred_fallthru
      _
    // Predicated region
    $region34: #{tpu_custom_call.1} parent=1 // pred_check
      _
    $region35: #{tpu_custom_call.1} parent=1 // pred_check_branch
      %343 = sbr.rel (0) target = $region37
    $region36: #{tpu_custom_call.1} parent=1 // pred_region
      %s345 = ssub.s32 64, 64
      %346 = vsyncadd [#allocation10], %s345
      %s348 = sshll.u32 [#allocation9], 4
      %s349 = int_to_ptr.vmem [resolvable:$true] %s348
      %351 = dma.vmem_to_hbm [thread:$0]  %s349, 64, %s5, [#allocation10]
    $region37: #{tpu_custom_call.1} parent=1 // pred_fallthru
      _
    // Predicated region
    $region38: #{tpu_custom_call.1} parent=1 // pred_check
      _
    $region39: #{tpu_custom_call.1} parent=1 // pred_check_branch
      %353 = sbr.rel (0) target = $region41
    $region40: #{tpu_custom_call.1} parent=1 // pred_region
      %354 = dma.done [#allocation4], 64
    $region41: #{tpu_custom_call.1} parent=1 // pred_fallthru
      _
    // Predicated region
    $region42: #{tpu_custom_call.1} parent=1 // pred_check
      _
    $region43: #{tpu_custom_call.1} parent=1 // pred_check_branch
      %356 = sbr.rel (0) target = $region45
    $region44: #{tpu_custom_call.1} parent=1 // pred_region
      %357 = dma.done [#allocation10], 64
    $region45: #{tpu_custom_call.1} parent=1 // pred_fallthru
      _
    %358 = vsyncpa [#allocation3], 1
    %359 = vsyncpa [#allocation6], 1
    %360 = vsyncpa [#allocation4], 1
    %361 = vsyncpa [#allocation10], 1

</llo_original>
